<compile_context>
chip_gen: v6e
topology: v6e:2x2x1
jax: 0.10.0
libtpu: 0.0.40
codegen_flags: <defaults>
</compile_context>

<pallas_src>
import numpy as np

import jax
import jax.numpy as jnp
from jax.experimental import pallas as pl
from jax.experimental.pallas import tpu as pltpu


def _band_counts(L, kernel_size):
    """(L, L) tap-count matrix: (counts @ x) / k == replicate-padded moving avg."""
    pad = (kernel_size - 1) // 2
    t = np.arange(L)[:, None]                       # (L, 1)
    d = np.arange(-pad, pad + 1)[None, :]           # (1, k)
    idx = np.clip(t + d, 0, L - 1)                  # (L, k) clamped taps
    W = np.zeros((L, L), dtype=np.float32)
    np.add.at(W, (np.broadcast_to(t, idx.shape), idx), 1.0)
    return W                                        # integer-valued counts


def series_decomp(x, kernel_size):
    """x: (B, L, C). Returns (res, moving_mean), both (B, L, C)."""
    B, L, C = x.shape
    # Odd kernel_size required so AvgPool1d output length matches L (the
    # PyTorch module is only used this way; even k would break res = x - mean).
    assert kernel_size % 2 == 1, "series_decomp requires an odd kernel_size"

    # Matmul dtype: bf16 path only when the input is already bf16 (tap counts
    # are exact in bf16, accumulation is f32, so no extra precision loss).
    mm_dtype = jnp.bfloat16 if x.dtype == jnp.bfloat16 else jnp.float32
    W = jnp.asarray(_band_counts(L, kernel_size), dtype=mm_dtype)
    inv_k = 1.0 / float(kernel_size)

    itemsize = jnp.dtype(x.dtype).itemsize
    w_itemsize = jnp.dtype(mm_dtype).itemsize

    # --- channel (lane) tile: full C when small, else lane-dense 256/512 tiles.
    if C <= 256:
        TC = C
    elif C < 512:
        TC = 256
    else:
        TC = 512

    # --- batch tile: largest divisor of B among {8, 4, 2, 1}.
    TB = next(t for t in (8, 4, 2, 1) if B % t == 0)

    # --- keep double-buffered blocks + resident W under a conservative budget
    #     (safe on v5e/v6e/v7x scoped VMEM once vmem_limit_bytes is raised).
    w_vmem = 2 * L * L * w_itemsize                  # W is double-buffered too

    def blocks_vmem(tb, tc):
        return 6 * tb * L * tc * itemsize            # (x, res, mean) x 2 buffers

    budget = 24 * 1024 * 1024
    while TB > 1 and blocks_vmem(TB, TC) + w_vmem > budget:
        TB //= 2
    while TC > 128 and TC % 128 == 0 and blocks_vmem(TB, TC) + w_vmem > budget:
        TC //= 2

    nB = B // TB
    nC = pl.cdiv(C, TC)

    # --- guarantee >= 2 parallel grid steps when the input allows it, so both
    #     v7x TensorCores get work and the DMA pipeline has steps to overlap.
    if nB * nC < 2:
        if TB > 1:
            TB //= 2
            nB = B // TB
        elif C > 128:
            TC = 128
            nC = pl.cdiv(C, TC)

    vmem_limit = int(min(max(blocks_vmem(TB, TC) + w_vmem + (2 << 20), 32 << 20),
                         96 << 20))

    cost = pl.CostEstimate(
        flops=2 * B * L * L * C,                     # dense banded matmul
        transcendentals=0,
        bytes_accessed=3 * B * L * C * itemsize + L * L * w_itemsize,
    )

    def _decomp_kernel(w_ref, x_ref, res_ref, mean_ref):
        # w_ref: (L, L) tap counts (resident); x/res/mean refs: (TB, L, TC).
        w = w_ref[...]
        for b in range(TB):                          # static unroll, TB <= 8
            xb = x_ref[b]                            # (L, TC)
            mean = jnp.dot(w, xb.astype(mm_dtype),
                           preferred_element_type=jnp.float32) * inv_k
            mean_ref[b] = mean.astype(mean_ref.dtype)
            res_ref[b] = (xb.astype(jnp.float32) - mean).astype(res_ref.dtype)

    res, mean = pl.pallas_call(
        _decomp_kernel,
        out_shape=(
            jax.ShapeDtypeStruct((B, L, C), x.dtype),
            jax.ShapeDtypeStruct((B, L, C), x.dtype),
        ),
        grid_spec=pltpu.PrefetchScalarGridSpec(
            num_scalar_prefetch=0,
            grid=(nB, nC),
            in_specs=[
                # Constant block index -> loaded once, stays resident in VMEM.
                pl.BlockSpec((L, L), lambda i, j: (0, 0)),
                pl.BlockSpec((TB, L, TC), lambda i, j: (i, 0, j)),
            ],
            out_specs=[
                pl.BlockSpec((TB, L, TC), lambda i, j: (i, 0, j)),
                pl.BlockSpec((TB, L, TC), lambda i, j: (i, 0, j)),
            ],
        ),
        compiler_params=pltpu.CompilerParams(
            dimension_semantics=("parallel", "parallel"),
            vmem_limit_bytes=vmem_limit,
        ),
        cost_estimate=cost,
    )(W, x)
    return res, mean


def _reference(x, kernel_size):
    x = x.astype(jnp.float32)
    pad = (kernel_size - 1) // 2
    front = jnp.repeat(x[:, 0:1, :], pad, axis=1)
    end = jnp.repeat(x[:, -1:, :], pad, axis=1)
    xp = jnp.concatenate([front, x, end], axis=1)
    L = x.shape[1]
    windows = jnp.stack([xp[:, i:i + L, :] for i in range(kernel_size)], axis=0)
    mean = jnp.mean(windows, axis=0)
    return x - mean, mean


if __name__ == "__main__":
    # Test 1: small shapes matching the module's typical toy usage (f32).
    B, L, C = 2, 16, 8
    kernel_size = 5
    x = jax.random.normal(jax.random.PRNGKey(0), (B, L, C), dtype=jnp.float32)

    res, mean = series_decomp(x, kernel_size)
    jax.block_until_ready((res, mean))
    res_ref, mean_ref = _reference(x, kernel_size)
    assert jnp.allclose(mean, mean_ref, atol=1e-4), "mean mismatch (test 1)"
    assert jnp.allclose(res, res_ref, atol=1e-4), "res mismatch (test 1)"

    # Test 2: channel-tiling path (C > 256 -> TC=256, partial last lane tile).
    B2, L2, C2, k2 = 1, 20, 300, 7
    x2 = jax.random.normal(jax.random.PRNGKey(1), (B2, L2, C2), dtype=jnp.float32)

    res2, mean2 = series_decomp(x2, k2)
    jax.block_until_ready((res2, mean2))
    res2_ref, mean2_ref = _reference(x2, k2)
    assert jnp.allclose(mean2, mean2_ref, atol=1e-4), "mean mismatch (test 2)"
    assert jnp.allclose(res2, res2_ref, atol=1e-4), "res mismatch (test 2)"

    # Test 3: bf16 input -> bf16 MXU path + batch-blocked grid (TB > 1).
    B3, L3, C3, k3 = 4, 24, 160, 9
    x3 = jax.random.normal(jax.random.PRNGKey(2), (B3, L3, C3),
                           dtype=jnp.float32).astype(jnp.bfloat16)

    res3, mean3 = series_decomp(x3, k3)
    jax.block_until_ready((res3, mean3))
    res3_ref, mean3_ref = _reference(x3, k3)
    assert jnp.allclose(mean3.astype(jnp.float32), mean3_ref, atol=2e-2), \
        "mean mismatch (test 3)"
    assert jnp.allclose(res3.astype(jnp.float32), res3_ref, atol=2e-2), \
        "res mismatch (test 3)"

    print("KERNEL_OK")
</pallas_src>

<mosaic_0001>
module attributes {stable_mosaic.version = 11 : i64} {
  func.func @_decomp_kernel(%arg0: i32, %arg1: i32, %arg2: memref<16x16xf32, #tpu.memory_space<vmem>>, %arg3: memref<1x16x8xf32, #tpu.memory_space<vmem>>, %arg4: memref<1x16x8xf32, #tpu.memory_space<vmem>>, %arg5: memref<1x16x8xf32, #tpu.memory_space<vmem>>) attributes {dimension_semantics = [#tpu.dimension_semantics<parallel>, #tpu.dimension_semantics<parallel>], iteration_bounds = array<i64: 2, 1>, scalar_prefetch = 0 : i64, scratch_operands = 0 : i64, tpu.core_type = #tpu.core_type<tc>, window_params = [{pipeline_mode = #tpu.pipeline_mode<synchronous>, transform_indices = @transform_0, window_bounds = array<i64: 16, 16>}, {transform_indices = @transform_1, window_bounds = array<i64: 1, 16, 8>}, {transform_indices = @transform_2, window_bounds = array<i64: 1, 16, 8>}, {transform_indices = @transform_3, window_bounds = array<i64: 1, 16, 8>}]} {
    %c0 = arith.constant 0 : index
    %c0_0 = arith.constant 0 : index
    %0 = vector.load %arg2[%c0, %c0_0] : memref<16x16xf32, #tpu.memory_space<vmem>>, vector<16x16xf32>
    %c0_1 = arith.constant 0 : index
    %c0_2 = arith.constant 0 : index
    %c0_3 = arith.constant 0 : index
    %1 = vector.load %arg3[%c0_1, %c0_2, %c0_3] : memref<1x16x8xf32, #tpu.memory_space<vmem>>, vector<1x16x8xf32>
    %2 = vector.shape_cast %1 : vector<1x16x8xf32> to vector<16x8xf32>
    %cst = arith.constant dense<0.000000e+00> : vector<16x8xf32>
    %3 = tpu.matmul %0, %2, %cst {dimension_numbers = #tpu.dot_dimension_numbers<[1], [0], [0], [1], [0, 0, 1, 1], [], []>} : vector<16x16xf32>, vector<16x8xf32>, vector<16x8xf32> -> vector<16x8xf32>
    %cst_4 = arith.constant 2.000000e-01 : f32
    %4 = vector.broadcast %cst_4 : f32 to vector<16x8xf32>
    %5 = arith.mulf %3, %4 : vector<16x8xf32>
    %c0_5 = arith.constant 0 : index
    %c0_6 = arith.constant 0 : index
    %c0_7 = arith.constant 0 : index
    %6 = vector.load %arg5[%c0_5, %c0_6, %c0_7] : memref<1x16x8xf32, #tpu.memory_space<vmem>>, vector<1x16x8xf32>
    %7 = vector.shape_cast %6 : vector<1x16x8xf32> to vector<16x8xf32>
    %8 = vector.shape_cast %5 : vector<16x8xf32> to vector<1x16x8xf32>
    tpu.vector_store %arg5[%c0_5, %c0_6, %c0_7], %8 {strides = array<i32>} : memref<1x16x8xf32, #tpu.memory_space<vmem>>, vector<1x16x8xf32>,
    %9 = arith.subf %2, %5 : vector<16x8xf32>
    %c0_8 = arith.constant 0 : index
    %c0_9 = arith.constant 0 : index
    %c0_10 = arith.constant 0 : index
    %10 = vector.load %arg4[%c0_8, %c0_9, %c0_10] : memref<1x16x8xf32, #tpu.memory_space<vmem>>, vector<1x16x8xf32>
    %11 = vector.shape_cast %10 : vector<1x16x8xf32> to vector<16x8xf32>
    %12 = vector.shape_cast %9 : vector<16x8xf32> to vector<1x16x8xf32>
    tpu.vector_store %arg4[%c0_8, %c0_9, %c0_10], %12 {strides = array<i32>} : memref<1x16x8xf32, #tpu.memory_space<vmem>>, vector<1x16x8xf32>,
    return
  }
  func.func @transform_0(%arg0: i32, %arg1: i32) -> (i32, i32) {
    %c0_i32 = arith.constant 0 : i32
    %c0_i32_0 = arith.constant 0 : i32
    %c0_i32_1 = arith.constant 0 : i32
    return %c0_i32, %c0_i32_0 : i32, i32
  }
  func.func @transform_1(%arg0: i32, %arg1: i32) -> (i32, i32, i32) {
    %c0_i32 = arith.constant 0 : i32
    %c0_i32_0 = arith.constant 0 : i32
    return %arg0, %c0_i32, %arg1 : i32, i32, i32
  }
  func.func @transform_2(%arg0: i32, %arg1: i32) -> (i32, i32, i32) {
    %c0_i32 = arith.constant 0 : i32
    %c0_i32_0 = arith.constant 0 : i32
    return %arg0, %c0_i32, %arg1 : i32, i32, i32
  }
  func.func @transform_3(%arg0: i32, %arg1: i32) -> (i32, i32, i32) {
    %c0_i32 = arith.constant 0 : i32
    %c0_i32_0 = arith.constant 0 : i32
    return %arg0, %c0_i32, %arg1 : i32, i32, i32
  }
}

</mosaic_0001>

<llo_original>
// kernel: tpu_custom_call.1
$region0: #{tpu_custom_call.1}
  #allocation0 [shape = 'u32[]', space=smem, size = 0x4, offset = 0x4, fixed_abs, tag = 'smem constant byte address 0x4 - core index']
  #allocation1 [shape = 'u32[144,128]{1,0:T(1,128)}', space=vmem, size = 0x12000, scoped, tag = 'internal scratch']
  %s0 = inlined_call_operand.vmem [shape: f32[16,16], index: 0, kind: input, shape index: {}]
  %s1 = inlined_call_operand.vmem [shape: f32[2,16,8], index: 1, kind: input, shape index: {}]
  %s2 = inlined_call_operand.vmem [shape: f32[2,16,8], index: 2, kind: output, shape index: {0}]
  %s3 = inlined_call_operand.vmem [shape: f32[2,16,8], index: 3, kind: output, shape index: {1}]
  %4 = xla_tuple %s2, %s3
  %s5 = sld [smem:[#allocation0]]
  $region49: #{tpu_custom_call.1} parent=0
    _
  %s7 = ssub.s32 1, %s5
  %s8 = scalar_select 0, %s7, %s5
  loop: start=0, step=1, limit=4
  $region2: #{tpu_custom_call.1} parent=0 // loop_pre_header
    _
  $region3: #{tpu_custom_call.1} parent=0 // loop_header
    %s10 = sphi 0, %s14
    %p11 = scmp.ge.s32.totalorder %s10, 4
    %s17 = sphi 0, %s29
    %s18 = sphi 0, %s25
    %s19 = sphi 0, %s17
    %s20 = sphi 0, %s18
    %s21 = sphi 0, %s19
    %s22 = sphi 0, %s20
    %s30 = sphi 0, %s30
    %s32 = sphi 0, %s30
    %s33 = sphi 0, %s32
    %s47 = sphi 0, %s33
    %s55 = sphi 0, %s57
    %s58 = sphi 0, %s55
    %s59 = sphi 0, %s58
    %s75 = sphi 0, %s59
    %s83 = sphi 0, %s85
    %s86 = sphi 0, %s83
    %s87 = sphi 0, %s86
    %s103 = sphi 0, %s87
    %s111 = sphi 0, %s113
    %s114 = sphi 0, %s111
    %s115 = sphi 0, %s114
    %s131 = sphi 0, %s115
  $region4: #{tpu_custom_call.1} parent=0 // loop_header_branch
    %13 = sbr.rel (%p11) target = $region8
  $region5: #{tpu_custom_call.1} parent=0 // loop_body
    %s15 = ssub.s32 %s10, 1
    %s16 = ssub.s32 %s10, 2
    %s23 = sadd.s32 1, %s18
    %p24 = scmp.ge.s32.totalorder %s23, 1
    %s25 = scalar_select %p24, 0, %s23
    %s26 = sadd.s32 1, %s17
    %s27 = scalar_select %p24, %s26, %s17
    %p28 = scmp.ge.s32.totalorder %s27, 2
    %s29 = scalar_select %p28, 0, %s27
    %s31 = sadd.s32 %s30, 1
    %p34 = scmp.eq.s32.totalorder %s10, 1
    %p35 = scmp.ne.s32.totalorder %s30, %s32
    %p36 = scmp.eq.s32.totalorder %s10, 0
    %p37 = por %p35, %p36
    %p38 = scmp.ne.s32.totalorder %s30, %s32
    %p39 = scmp.eq.s32.totalorder %s15, 1
    %p40 = por %p38, %p39
    %p41 = scmp.ne.s32.totalorder %s32, %s33
    %p42 = scmp.eq.s32.totalorder %s15, 0
    %p43 = por %p41, %p42
    %p44 = scmp.ne.s32.totalorder %s32, %s33
    %p45 = scmp.eq.s32.totalorder %s16, 1
    %p46 = por %p44, %p45
    %p48 = scmp.ne.s32.totalorder %s33, %s47
    %p49 = scmp.eq.s32.totalorder %s16, 0
    %p50 = por %p48, %p49
    %s51 = ssub.s32 %s17, %s29
    %s52 = ssub.s32 %s18, %s25
    %s53 = sor.u32 %s51, %s52
    %p54 = scmp.eq.s32.totalorder %s53, 0
    %s56 = sadd.s32 %s55, 1
    %s57 = scalar_select %p54, %s55, %s56
    %p60 = pneg %p54
    %p61 = scmp.eq.s32.totalorder %s10, 1
    %p62 = por %p60, %p61
    %p63 = scmp.ne.s32.totalorder %s55, %s58
    %p64 = scmp.eq.s32.totalorder %s10, 0
    %p65 = por %p63, %p64
    %p66 = scmp.ne.s32.totalorder %s55, %s58
    %p67 = scmp.eq.s32.totalorder %s15, 1
    %p68 = por %p66, %p67
    %p69 = scmp.ne.s32.totalorder %s58, %s59
    %p70 = scmp.eq.s32.totalorder %s15, 0
    %p71 = por %p69, %p70
    %p72 = scmp.ne.s32.totalorder %s58, %s59
    %p73 = scmp.eq.s32.totalorder %s16, 1
    %p74 = por %p72, %p73
    %p76 = scmp.ne.s32.totalorder %s59, %s75
    %p77 = scmp.eq.s32.totalorder %s16, 0
    %p78 = por %p76, %p77
    %s79 = ssub.s32 %s17, %s29
    %s80 = ssub.s32 %s18, %s25
    %s81 = sor.u32 %s79, %s80
    %p82 = scmp.eq.s32.totalorder %s81, 0
    %s84 = sadd.s32 %s83, 1
    %s85 = scalar_select %p82, %s83, %s84
    %p88 = pneg %p82
    %p89 = scmp.eq.s32.totalorder %s10, 1
    %p90 = por %p88, %p89
    %p91 = scmp.ne.s32.totalorder %s83, %s86
    %p92 = scmp.eq.s32.totalorder %s10, 0
    %p93 = por %p91, %p92
    %p94 = scmp.ne.s32.totalorder %s83, %s86
    %p95 = scmp.eq.s32.totalorder %s15, 1
    %p96 = por %p94, %p95
    %p97 = scmp.ne.s32.totalorder %s86, %s87
    %p98 = scmp.eq.s32.totalorder %s15, 0
    %p99 = por %p97, %p98
    %p100 = scmp.ne.s32.totalorder %s86, %s87
    %p101 = scmp.eq.s32.totalorder %s16, 1
    %p102 = por %p100, %p101
    %p104 = scmp.ne.s32.totalorder %s87, %s103
    %p105 = scmp.eq.s32.totalorder %s16, 0
    %p106 = por %p104, %p105
    %s107 = ssub.s32 %s17, %s29
    %s108 = ssub.s32 %s18, %s25
    %s109 = sor.u32 %s107, %s108
    %p110 = scmp.eq.s32.totalorder %s109, 0
    %s112 = sadd.s32 %s111, 1
    %s113 = scalar_select %p110, %s111, %s112
    %p116 = pneg %p110
    %p117 = scmp.eq.s32.totalorder %s10, 1
    %p118 = por %p116, %p117
    %p119 = scmp.ne.s32.totalorder %s111, %s114
    %p120 = scmp.eq.s32.totalorder %s10, 0
    %p121 = por %p119, %p120
    %p122 = scmp.ne.s32.totalorder %s111, %s114
    %p123 = scmp.eq.s32.totalorder %s15, 1
    %p124 = por %p122, %p123
    %p125 = scmp.ne.s32.totalorder %s114, %s115
    %p126 = scmp.eq.s32.totalorder %s15, 0
    %p127 = por %p125, %p126
    %p128 = scmp.ne.s32.totalorder %s114, %s115
    %p129 = scmp.eq.s32.totalorder %s16, 1
    %p130 = por %p128, %p129
    %p132 = scmp.ne.s32.totalorder %s115, %s131
    %p133 = scmp.eq.s32.totalorder %s16, 0
    %p134 = por %p132, %p133
    %p135 = scmp.le.s32.totalorder 1, %s10
    %p136 = scmp.lt.s32.totalorder %s10, 3
    %p137 = pnand %p135, %p136
    %p138 = pneg %p137
    // Predicated region
    $region9: #{tpu_custom_call.1} parent=5 // pred_check
      _
    $region10: #{tpu_custom_call.1} parent=5 // pred_check_branch
      %140 = sbr.rel (%p137) target = $region12
    $region11: #{tpu_custom_call.1} parent=5 // pred_region
      %s141 = ssub.s32 %s10, 1
      // Predicated region
      $region13: #{tpu_custom_call.1} parent=11 // pred_check
        %p142 = pneg %p43
      $region14: #{tpu_custom_call.1} parent=11 // pred_check_branch
        %144 = sbr.rel (%p142) target = $region16
      $region15: #{tpu_custom_call.1} parent=11 // pred_region
        _
      $region16: #{tpu_custom_call.1} parent=11 // pred_fallthru
        _
    $region12: #{tpu_custom_call.1} parent=5 // pred_fallthru
      _
    %p145 = scmp.lt.s32.totalorder %s10, 2
    // Predicated region
    $region17: #{tpu_custom_call.1} parent=5 // pred_check
      %p146 = pneg %p145
    $region18: #{tpu_custom_call.1} parent=5 // pred_check_branch
      %148 = sbr.rel (%p146) target = $region20
    $region19: #{tpu_custom_call.1} parent=5 // pred_region
      // Predicated region
      $region21: #{tpu_custom_call.1} parent=19 // pred_check
        %p149 = pneg %p65
      $region22: #{tpu_custom_call.1} parent=19 // pred_check_branch
        %151 = sbr.rel (%p149) target = $region24
      $region23: #{tpu_custom_call.1} parent=19 // pred_region
        %p152 = scmp.lt.s32.totalorder %s17, 1
        %s153 = scalar_select %p152, %s17, 1
        %p154 = scmp.lt.s32.totalorder %s18, 0
        %s155 = scalar_select %p154, %s18, 0
        %s156 = smul.addr %s153, 2
        %s157 = sadd.s32 %s155, %s156
        %s158 = smul.addr %s157, 8
        %s159 = scalar_lea.vmem %s1, %s158
      $region24: #{tpu_custom_call.1} parent=19 // pred_fallthru
        _
    $region20: #{tpu_custom_call.1} parent=5 // pred_fallthru
      _
    %p160 = scmp.le.s32.totalorder 1, %s10
    %p161 = scmp.lt.s32.totalorder %s10, 3
    %p162 = pnand %p160, %p161
    %p163 = pneg %p162
    // Predicated region
    $region25: #{tpu_custom_call.1} parent=5 // pred_check
      _
    $region26: #{tpu_custom_call.1} parent=5 // pred_check_branch
      %165 = sbr.rel (%p162) target = $region28
    $region27: #{tpu_custom_call.1} parent=5 // pred_region
      %s166 = ssub.s32 %s10, 1
      %p167 = pneg %p43
      %p168 = pneg %p40
      %p169 = scmp.lt.s32.totalorder %s19, 1
      %s170 = scalar_select %p169, %s19, 1
      %p171 = scmp.lt.s32.totalorder %s20, 0
      %s172 = scalar_select %p171, %s20, 0
      %s173 = smul.addr %s170, 2
      %s174 = sadd.s32 %s172, %s173
      %s175 = smul.addr %s174, 8
      %s176 = scalar_lea.vmem %s1, %s175
      %p177 = pneg %p71
      %p178 = pneg %p68
      %p179 = pneg %p99
      %p180 = pneg %p96
      %p181 = scmp.lt.s32.totalorder %s19, 1
      %s182 = scalar_select %p181, %s19, 1
      %p183 = scmp.lt.s32.totalorder %s20, 0
      %s184 = scalar_select %p183, %s20, 0
      %s185 = smul.addr %s182, 2
      %s186 = sadd.s32 %s184, %s185
      %s187 = smul.addr %s186, 8
      %s188 = scalar_lea.vmem %s2, %s187
      %p189 = pneg %p127
      %p190 = pneg %p124
      %p191 = scmp.lt.s32.totalorder %s19, 1
      %s192 = scalar_select %p191, %s19, 1
      %p193 = scmp.lt.s32.totalorder %s20, 0
      %s194 = scalar_select %p193, %s20, 0
      %s195 = smul.addr %s192, 2
      %s196 = sadd.s32 %s194, %s195
      %s197 = smul.addr %s196, 8
      %s198 = scalar_lea.vmem %s3, %s197
      %p199 = scmp.lt.s32.totalorder %s19, 1
      %s200 = scalar_select %p199, %s19, 1
      %p201 = scmp.lt.s32.totalorder %s20, 0
      %s202 = scalar_select %p201, %s20, 0
      %s203 = smul.addr %s200, 2
      %s204 = sadd.s32 %s202, %s203
      %s205 = smul.addr %s204, 8
      %s206 = scalar_lea.vmem %s1, %s205
      %p207 = scmp.lt.s32.totalorder %s19, 1
      %s208 = scalar_select %p207, %s19, 1
      %p209 = scmp.lt.s32.totalorder %s20, 0
      %s210 = scalar_select %p209, %s20, 0
      %s211 = smul.addr %s208, 2
      %s212 = sadd.s32 %s210, %s211
      %s213 = smul.addr %s212, 8
      %s214 = scalar_lea.vmem %s2, %s213
      %p215 = scmp.lt.s32.totalorder %s19, 1
      %s216 = scalar_select %p215, %s19, 1
      %p217 = scmp.lt.s32.totalorder %s20, 0
      %s218 = scalar_select %p217, %s20, 0
      %s219 = smul.addr %s216, 2
      %s220 = sadd.s32 %s218, %s219
      %s221 = smul.addr %s220, 8
      %s222 = scalar_lea.vmem %s3, %s221
      %v223 = vld [vmem:[%s0] sm:$0xff]
      %v224 = vld [vmem:[%s0 + $0x8] sm:$0xff]
      %v225 = vld [vmem:[%s206] sm:$0xff]
      %v226 = vld [vmem:[%s206 + $0x8] sm:$0xff]
      %vm227 = vcmask 130048
      %v229 = vsel %vm227, %v223, 0
      %v232 = vsel %vm227, %v224, 0
      %234 = vmatprep.subr.mxu0 0.0
      %235 = vmatpush1.msra.mxu0 0.0
      %236 = vmatprep.subr.mxu0 0.0
      %237 = vmatpush1.msra.mxu0 0.0
      %238 = vmatprep.subr.mxu0 0.0
      %239 = vmatpush1.msra.mxu0 0.0
      %240 = vmatprep.subr.mxu0 0.0
      %241 = vmatpush1.msra.mxu0 0.0
      %242 = vmatprep.subr.mxu0 0.0
      %243 = vmatpush1.msra.mxu0 0.0
      %244 = vmatprep.subr.mxu0 0.0
      %245 = vmatpush1.msra.mxu0 0.0
      %246 = vmatprep.subr.mxu0 0.0
      %247 = vmatpush1.msra.mxu0 0.0
      %248 = vmatprep.subr.mxu0 0.0
      %249 = vmatpush1.msra.mxu0 0.0
      %250 = vmatprep.subr.mxu0 0.0
      %251 = vmatpush1.msra.mxu0 0.0
      %252 = vmatprep.subr.mxu0 0.0
      %253 = vmatpush1.msra.mxu0 0.0
      %254 = vmatprep.subr.mxu0 0.0
      %255 = vmatpush1.msra.mxu0 0.0
      %256 = vmatprep.subr.mxu0 0.0
      %257 = vmatpush1.msra.mxu0 0.0
      %258 = vmatprep.subr.mxu0 0.0
      %259 = vmatpush1.msra.mxu0 0.0
      %260 = vmatprep.subr.mxu0 0.0
      %261 = vmatpush1.msra.mxu0 0.0
      %262 = vmatprep.subr.mxu0 0.0
      %263 = vmatpush1.msra.mxu0 %v226
      %264 = vmatprep.subr.mxu0 0.0
      %265 = vmatpush1.msra.mxu0 %v225
      %266 = vmatprep.subr.mxu0 0.0
      %267 = vmatpush2.msra.mxu0 0.0
      %268 = vmatprep.subr.mxu0 0.0
      %269 = vmatpush2.msra.mxu0 0.0
      %270 = vmatprep.subr.mxu0 0.0
      %271 = vmatpush2.msra.mxu0 0.0
      %272 = vmatprep.subr.mxu0 0.0
      %273 = vmatpush2.msra.mxu0 0.0
      %274 = vmatprep.subr.mxu0 0.0
      %275 = vmatpush2.msra.mxu0 0.0
      %276 = vmatprep.subr.mxu0 0.0
      %277 = vmatpush2.msra.mxu0 0.0
      %278 = vmatprep.subr.mxu0 0.0
      %279 = vmatpush2.msra.mxu0 0.0
      %280 = vmatprep.subr.mxu0 0.0
      %281 = vmatpush2.msra.mxu0 0.0
      %282 = vmatprep.subr.mxu0 0.0
      %283 = vmatpush2.msra.mxu0 0.0
      %284 = vmatprep.subr.mxu0 0.0
      %285 = vmatpush2.msra.mxu0 0.0
      %286 = vmatprep.subr.mxu0 0.0
      %287 = vmatpush2.msra.mxu0 0.0
      %288 = vmatprep.subr.mxu0 0.0
      %289 = vmatpush2.msra.mxu0 0.0
      %290 = vmatprep.subr.mxu0 0.0
      %291 = vmatpush2.msra.mxu0 0.0
      %292 = vmatprep.subr.mxu0 0.0
      %293 = vmatpush2.msra.mxu0 0.0
      %294 = vmatprep.subr.mxu0 0.0
      %295 = vmatpush2.msra.mxu0 0.0
      %296 = vmatprep.subr.mxu0 0.0
      %297 = vmatpush2.msra.mxu0 0.0
      %298 = vmatprep.mubr.f32.mxu0 0.0
      %299 = vmatmul.mubr.f32.gmra.mxu0 %v229
      %v300 = vpop.f32.mrf.mxu0
      %v301 = vadd.f32 0.0, %v300
      %v302 = vpop.f32.mrf.mxu0
      %303 = vmatprep.mubr.f32.mxu0 0.0
      %304 = vmatmul.mubr.f32.gmra.mxu0 %v232
      %v305 = vpop.f32.mrf.mxu0
      %v306 = vadd.f32 0.0, %v305
      %v307 = vpop.f32.mrf.mxu0
      %308 = vdwg.mxu0
      %v309 = vmul.f32 %v301, 0.2
      %v310 = vmul.f32 %v306, 0.2
      %vm311 = vcmask 64512
      %312 = vst.msk [vmem:[%s222] sm:$0xff] %vm311, %v309
      %313 = vst.msk [vmem:[%s222 + $0x8] sm:$0xff] %vm311, %v310
      %v314 = vsub.f32 %v225, %v309
      %v315 = vsub.f32 %v226, %v310
      %316 = vst.msk [vmem:[%s214] sm:$0xff] %vm311, %v314
      %317 = vst.msk [vmem:[%s214 + $0x8] sm:$0xff] %vm311, %v315
      %p318 = scmp.lt.s32.totalorder %s19, 1
      %s319 = scalar_select %p318, %s19, 1
      %p320 = scmp.lt.s32.totalorder %s20, 0
      %s321 = scalar_select %p320, %s20, 0
      %s322 = smul.addr %s319, 2
      %s323 = sadd.s32 %s321, %s322
      %s324 = smul.addr %s323, 8
      %s325 = scalar_lea.vmem %s2, %s324
      %p326 = scmp.lt.s32.totalorder %s19, 1
      %s327 = scalar_select %p326, %s19, 1
      %p328 = scmp.lt.s32.totalorder %s20, 0
      %s329 = scalar_select %p328, %s20, 0
      %s330 = smul.addr %s327, 2
      %s331 = sadd.s32 %s329, %s330
      %s332 = smul.addr %s331, 8
      %s333 = scalar_lea.vmem %s3, %s332
      // Predicated region
      $region29: #{tpu_custom_call.1} parent=27 // pred_check
        %p334 = pneg %p96
      $region30: #{tpu_custom_call.1} parent=27 // pred_check_branch
        %336 = sbr.rel (%p334) target = $region32
      $region31: #{tpu_custom_call.1} parent=27 // pred_region
        _
      $region32: #{tpu_custom_call.1} parent=27 // pred_fallthru
        _
      // Predicated region
      $region33: #{tpu_custom_call.1} parent=27 // pred_check
        %p337 = pneg %p124
      $region34: #{tpu_custom_call.1} parent=27 // pred_check_branch
        %339 = sbr.rel (%p337) target = $region36
      $region35: #{tpu_custom_call.1} parent=27 // pred_region
        _
      $region36: #{tpu_custom_call.1} parent=27 // pred_fallthru
        _
    $region28: #{tpu_custom_call.1} parent=5 // pred_fallthru
      _
    %p340 = scmp.le.s32.totalorder 2, %s10
    // Predicated region
    $region37: #{tpu_custom_call.1} parent=5 // pred_check
      %p341 = pneg %p340
    $region38: #{tpu_custom_call.1} parent=5 // pred_check_branch
      %343 = sbr.rel (%p341) target = $region40
    $region39: #{tpu_custom_call.1} parent=5 // pred_region
      %s344 = ssub.s32 %s10, 2
      // Predicated region
      $region41: #{tpu_custom_call.1} parent=39 // pred_check
        %p345 = pneg %p102
      $region42: #{tpu_custom_call.1} parent=39 // pred_check_branch
        %347 = sbr.rel (%p345) target = $region44
      $region43: #{tpu_custom_call.1} parent=39 // pred_region
        %p348 = scmp.lt.s32.totalorder %s21, 1
        %s349 = scalar_select %p348, %s21, 1
        %p350 = scmp.lt.s32.totalorder %s22, 0
        %s351 = scalar_select %p350, %s22, 0
        %s352 = smul.addr %s349, 2
        %s353 = sadd.s32 %s351, %s352
        %s354 = smul.addr %s353, 8
        %s355 = scalar_lea.vmem %s2, %s354
      $region44: #{tpu_custom_call.1} parent=39 // pred_fallthru
        _
      // Predicated region
      $region45: #{tpu_custom_call.1} parent=39 // pred_check
        %p356 = pneg %p130
      $region46: #{tpu_custom_call.1} parent=39 // pred_check_branch
        %358 = sbr.rel (%p356) target = $region48
      $region47: #{tpu_custom_call.1} parent=39 // pred_region
        %p359 = scmp.lt.s32.totalorder %s21, 1
        %s360 = scalar_select %p359, %s21, 1
        %p361 = scmp.lt.s32.totalorder %s22, 0
        %s362 = scalar_select %p361, %s22, 0
        %s363 = smul.addr %s360, 2
        %s364 = sadd.s32 %s362, %s363
        %s365 = smul.addr %s364, 8
        %s366 = scalar_lea.vmem %s3, %s365
      $region48: #{tpu_custom_call.1} parent=39 // pred_fallthru
        _
    $region40: #{tpu_custom_call.1} parent=5 // pred_fallthru
      _
  $region6: #{tpu_custom_call.1} parent=0 // loop_footer
    %s14 = sadd.s32 1, %s10
  $region7: #{tpu_custom_call.1} parent=0 // loop_footer_branch
    %9 = sbr.rel target = $region3
  $region8: #{tpu_custom_call.1} parent=0 // loop_exit
    _

</llo_original>
